<compile_context>
chip_gen: v5e
topology: v5e:2x2
jax: 0.10.0
libtpu: 0.0.40
codegen_flags: <defaults>
</compile_context>

<pallas_src>
import functools

import jax
import jax.numpy as jnp
from jax import lax
from jax.experimental import pallas as pl
from jax.experimental.pallas import tpu as pltpu


def _focal_loss_kernel(logits_ref, tgt_ref, w_ref, part_ref, *, gamma, gamma_is_int):
    """One grid step: a (TM, C) row tile -> one (8, 128) partial block.

    part_ref[0, 0] = sum_i -w[t_i] * (1 - p_{i,t_i})^gamma * log p_{i,t_i}
    part_ref[0, 1] = sum_i  w[t_i]
    (all other elements of the block are written as 0)
    Padded rows have target == -1 so the one-hot never matches -> both
    contributions are exactly zero.
    """
    x = logits_ref[...].astype(jnp.float32)        # (TM, C) cast in-kernel
    t = tgt_ref[...]                               # (TM, 1) int32
    w = w_ref[...].astype(jnp.float32)             # (1,  C)

    # Row-wise logsumexp (lane reduction over the class axis).
    m = jnp.max(x, axis=-1, keepdims=True)                                 # (TM, 1)
    lse = jnp.log(jnp.sum(jnp.exp(x - m), axis=-1, keepdims=True)) + m     # (TM, 1)

    # Gather the target-class logit / class weight with a one-hot mask
    # (no lane gather on TPU).
    col = lax.broadcasted_iota(jnp.int32, x.shape, 1)                      # (TM, C)
    onehot = col == t                                                      # (TM, C)
    x_t = jnp.sum(jnp.where(onehot, x, 0.0), axis=-1, keepdims=True)       # (TM, 1)
    w_t = jnp.sum(jnp.where(onehot, w, 0.0), axis=-1, keepdims=True)       # (TM, 1)

    # Target-class-only focal term: (1 - p_t)^gamma * log p_t.
    logp_t = x_t - lse                             # (TM, 1)
    p_t = jnp.exp(logp_t)                          # single exp per row
    q = 1.0 - p_t
    if gamma_is_int:
        focal = lax.integer_pow(q, int(gamma))     # VALU multiplies, no EUP pow
    else:
        focal = q ** jnp.float32(gamma)            # exp(gamma*log q) path
    fw_t = focal * logp_t                          # (TM, 1)

    num = jnp.sum(-w_t * fw_t, keepdims=True)      # (1, 1)
    den = jnp.sum(w_t, keepdims=True)              # (1, 1)

    # Lane-dense full-block store: num -> (0,0), den -> (0,1), zeros elsewhere.
    sub_i = lax.broadcasted_iota(jnp.int32, (8, 128), 0)
    lane_i = lax.broadcasted_iota(jnp.int32, (8, 128), 1)
    part_ref[...] = jnp.where(
        (sub_i == 0) & (lane_i == 0), num,
        jnp.where((sub_i == 0) & (lane_i == 1), den, 0.0))


def focal_loss(logits, targets, weight=None, *, gamma=2.0, reduction="mean",
               tm_max=512, vmem_budget_bytes=16 * 1024 * 1024):
    """Pallas focal loss. logits: (N, C) (any float dtype), targets: (N,) int,
    weight: optional (C,) float."""
    N, C = logits.shape
    if weight is None:
        weight = jnp.ones((C,), jnp.float32)

    # Sublane granularity of the logits tile depends on its native dtype.
    itemsize = jnp.dtype(logits.dtype).itemsize
    sub = {4: 8, 2: 16, 1: 32}.get(itemsize, 8)

    # Biggest row tile (multiple of `sub`) within a double-buffered VMEM budget.
    # TODO(synk): for vocab-scale C add a class-chunk grid axis with an
    # online-softmax carry instead of shrinking tm.
    tm = min(tm_max, N + (-N) % sub)
    tm = max(sub, (tm // sub) * sub)
    while tm > sub and 2 * tm * C * itemsize > vmem_budget_bytes:
        tm //= 2
    tm = max(sub, (tm // sub) * sub)

    n_tiles = pl.cdiv(N, tm)
    n_pad = n_tiles * tm

    # Pad rows: logits with zeros, targets with -1 (masked out of num & den).
    logits_p = jnp.pad(logits, ((0, n_pad - N), (0, 0)))
    tgt_p = jnp.pad(targets.astype(jnp.int32), (0, n_pad - N), constant_values=-1)
    tgt_p = tgt_p.reshape(n_pad, 1)
    w2d = weight.reshape(1, C).astype(jnp.float32)

    gamma = float(gamma)
    gamma_is_int = gamma.is_integer() and gamma >= 0.0

    parts = pl.pallas_call(
        functools.partial(_focal_loss_kernel, gamma=gamma, gamma_is_int=gamma_is_int),
        out_shape=jax.ShapeDtypeStruct((8 * n_tiles, 128), jnp.float32),
        grid_spec=pltpu.PrefetchScalarGridSpec(
            num_scalar_prefetch=0,
            grid=(n_tiles,),
            in_specs=[
                pl.BlockSpec((tm, C), lambda i: (i, 0)),   # logits (native dtype)
                pl.BlockSpec((tm, 1), lambda i: (i, 0)),   # targets
                pl.BlockSpec((1, C), lambda i: (0, 0)),    # class weights (broadcast)
            ],
            out_specs=pl.BlockSpec((8, 128), lambda i: (i, 0)),
        ),
        compiler_params=pltpu.CompilerParams(
            dimension_semantics=("parallel",)),            # tiles are independent
    )(logits_p, tgt_p, w2d)

    # Tiny final reduction in plain JAX (per-tile partials, zeros elsewhere).
    num = jnp.sum(parts[:, 0])
    den = jnp.sum(parts[:, 1])
    if reduction == "mean":
        return num / den
    if reduction == "sum":
        return num
    # TODO(synk): reduction='none' (per-element losses) not implemented.
    raise NotImplementedError(f"reduction={reduction!r}")


def focal_loss_ref(logits, targets, weight=None, gamma=2.0):
    """Pure-JAX reference matching the PyTorch module (reduction='mean')."""
    C = logits.shape[-1]
    if weight is None:
        weight = jnp.ones((C,), jnp.float32)
    logp = jax.nn.log_softmax(logits.astype(jnp.float32), axis=-1)
    p = jnp.exp(logp)
    fw = (1.0 - p) ** gamma * logp
    fw_t = jnp.take_along_axis(fw, targets[:, None], axis=-1)[:, 0]
    w_t = weight[targets].astype(jnp.float32)
    return jnp.sum(-w_t * fw_t) / jnp.sum(w_t)


if __name__ == "__main__":
    key = jax.random.PRNGKey(0)
    k1, k2, k3, k4 = jax.random.split(key, 4)

    # Test 1: f32 logits, integer gamma (16 tokens, 32 classes).
    N1, C1 = 16, 32
    logits1 = jax.random.normal(k1, (N1, C1), dtype=jnp.float32) * 2.0
    targets1 = jax.random.randint(k2, (N1,), 0, C1, dtype=jnp.int32)
    weight1 = jnp.linspace(0.5, 1.5, C1, dtype=jnp.float32)
    out1 = jax.block_until_ready(focal_loss(logits1, targets1, weight1, gamma=2.0))
    ref1 = focal_loss_ref(logits1, targets1, weight1, gamma=2.0)
    assert jnp.allclose(out1, ref1, rtol=1e-5, atol=1e-6), (out1, ref1)

    # Test 2: bf16 logits streamed natively, non-integer gamma, ragged N (padding path).
    N2, C2 = 50, 32
    logits2 = (jax.random.normal(k3, (N2, C2), dtype=jnp.float32) * 2.0).astype(jnp.bfloat16)
    targets2 = jax.random.randint(k4, (N2,), 0, C2, dtype=jnp.int32)
    weight2 = jnp.linspace(1.5, 0.5, C2, dtype=jnp.float32)
    out2 = jax.block_until_ready(focal_loss(logits2, targets2, weight2, gamma=1.5))
    ref2 = focal_loss_ref(logits2, targets2, weight2, gamma=1.5)
    assert jnp.allclose(out2, ref2, rtol=1e-4, atol=1e-5), (out2, ref2)

    print("KERNEL_OK")
</pallas_src>

<mosaic_0001>
module attributes {stable_mosaic.version = 11 : i64} {
  func.func @_focal_loss_kernel(%arg0: i32, %arg1: memref<16x32xf32, #tpu.memory_space<vmem>>, %arg2: memref<16x1xi32, #tpu.memory_space<vmem>>, %arg3: memref<1x32xf32, #tpu.memory_space<vmem>>, %arg4: memref<8x128xf32, #tpu.memory_space<vmem>>) attributes {dimension_semantics = [#tpu.dimension_semantics<parallel>], iteration_bounds = array<i64: 1>, scalar_prefetch = 0 : i64, scratch_operands = 0 : i64, tpu.core_type = #tpu.core_type<tc>, window_params = [{transform_indices = @transform_0, window_bounds = array<i64: 16, 32>}, {transform_indices = @transform_1, window_bounds = array<i64: 16, 1>}, {pipeline_mode = #tpu.pipeline_mode<synchronous>, transform_indices = @transform_2, window_bounds = array<i64: 1, 32>}, {transform_indices = @transform_3, window_bounds = array<i64: 8, 128>}]} {
    %c0 = arith.constant 0 : index
    %c0_0 = arith.constant 0 : index
    %0 = vector.load %arg1[%c0, %c0_0] : memref<16x32xf32, #tpu.memory_space<vmem>>, vector<16x32xf32>
    %c0_1 = arith.constant 0 : index
    %c0_2 = arith.constant 0 : index
    %1 = vector.load %arg2[%c0_1, %c0_2] : memref<16x1xi32, #tpu.memory_space<vmem>>, vector<16x1xi32>
    %c0_3 = arith.constant 0 : index
    %c0_4 = arith.constant 0 : index
    %2 = vector.load %arg3[%c0_3, %c0_4] : memref<1x32xf32, #tpu.memory_space<vmem>>, vector<1x32xf32>
    %cst = arith.constant dense<0xFF800000> : vector<16xf32>
    %3 = vector.multi_reduction <maximumf>, %0, %cst [1] : vector<16x32xf32> to vector<16xf32>
    %4 = vector.shape_cast %3 : vector<16xf32> to vector<16x1xf32>
    %5 = vector.broadcast %4 : vector<16x1xf32> to vector<16x32xf32>
    %6 = arith.subf %0, %5 : vector<16x32xf32>
    %7 = math.exp %6 : vector<16x32xf32>
    %cst_5 = arith.constant dense<0.000000e+00> : vector<16xf32>
    %8 = vector.multi_reduction <add>, %7, %cst_5 [1] : vector<16x32xf32> to vector<16xf32>
    %9 = vector.shape_cast %8 : vector<16xf32> to vector<16x1xf32>
    %10 = math.log %9 : vector<16x1xf32>
    %11 = arith.addf %10, %4 : vector<16x1xf32>
    %12 = tpu.iota {dimensions = array<i32: 1>} : vector<16x32xi32>
    %13 = vector.broadcast %1 : vector<16x1xi32> to vector<16x32xi32>
    %14 = arith.cmpi eq, %12, %13 : vector<16x32xi32>
    %cst_6 = arith.constant 0.000000e+00 : f32
    %15 = vector.broadcast %cst_6 : f32 to vector<16x32xf32>
    %16 = arith.select %14, %0, %15 : vector<16x32xi1>, vector<16x32xf32>
    %cst_7 = arith.constant dense<0.000000e+00> : vector<16xf32>
    %17 = vector.multi_reduction <add>, %16, %cst_7 [1] : vector<16x32xf32> to vector<16xf32>
    %18 = vector.shape_cast %17 : vector<16xf32> to vector<16x1xf32>
    %cst_8 = arith.constant 0.000000e+00 : f32
    %19 = vector.shape_cast %2 : vector<1x32xf32> to vector<1x32xf32>
    %20 = vector.broadcast %19 : vector<1x32xf32> to vector<16x32xf32>
    %21 = vector.broadcast %cst_8 : f32 to vector<16x32xf32>
    %22 = arith.select %14, %20, %21 : vector<16x32xi1>, vector<16x32xf32>
    %cst_9 = arith.constant dense<0.000000e+00> : vector<16xf32>
    %23 = vector.multi_reduction <add>, %22, %cst_9 [1] : vector<16x32xf32> to vector<16xf32>
    %24 = vector.shape_cast %23 : vector<16xf32> to vector<16x1xf32>
    %25 = arith.subf %18, %11 : vector<16x1xf32>
    %26 = math.exp %25 : vector<16x1xf32>
    %cst_10 = arith.constant 1.000000e+00 : f32
    %27 = vector.broadcast %cst_10 : f32 to vector<16x1xf32>
    %28 = arith.subf %27, %26 : vector<16x1xf32>
    %29 = arith.mulf %28, %28 : vector<16x1xf32>
    %30 = arith.mulf %29, %25 : vector<16x1xf32>
    %cst_11 = arith.constant 0.000000e+00 : f32
    %31 = vector.broadcast %cst_11 : f32 to vector<16x1xf32>
    %32 = arith.subf %31, %24 : vector<16x1xf32>
    %33 = arith.mulf %32, %30 : vector<16x1xf32>
    %34 = vector.shape_cast %33 : vector<16x1xf32> to vector<1x16x1xf32>
    %cst_12 = arith.constant dense<0.000000e+00> : vector<1xf32>
    %35 = vector.multi_reduction <add>, %34, %cst_12 [1, 2] : vector<1x16x1xf32> to vector<1xf32>
    %36 = vector.shape_cast %35 : vector<1xf32> to vector<1x1x1xf32>
    %37 = vector.extract %36[0, 0, 0] : f32 from vector<1x1x1xf32>
    %38 = vector.broadcast %37 : f32 to vector<1x1xf32>
    %39 = vector.shape_cast %24 : vector<16x1xf32> to vector<1x16x1xf32>
    %cst_13 = arith.constant dense<0.000000e+00> : vector<1xf32>
    %40 = vector.multi_reduction <add>, %39, %cst_13 [1, 2] : vector<1x16x1xf32> to vector<1xf32>
    %41 = vector.shape_cast %40 : vector<1xf32> to vector<1x1x1xf32>
    %42 = vector.extract %41[0, 0, 0] : f32 from vector<1x1x1xf32>
    %43 = vector.broadcast %42 : f32 to vector<1x1xf32>
    %44 = tpu.iota {dimensions = array<i32: 0>} : vector<8x128xi32>
    %45 = tpu.iota {dimensions = array<i32: 1>} : vector<8x128xi32>
    %c0_i32 = arith.constant 0 : i32
    %46 = vector.broadcast %c0_i32 : i32 to vector<8x128xi32>
    %47 = arith.cmpi eq, %44, %46 : vector<8x128xi32>
    %c0_i32_14 = arith.constant 0 : i32
    %48 = vector.broadcast %c0_i32_14 : i32 to vector<8x128xi32>
    %49 = arith.cmpi eq, %45, %48 : vector<8x128xi32>
    %50 = arith.andi %47, %49 : vector<8x128xi1>
    %c0_i32_15 = arith.constant 0 : i32
    %51 = vector.broadcast %c0_i32_15 : i32 to vector<8x128xi32>
    %52 = arith.cmpi eq, %44, %51 : vector<8x128xi32>
    %c1_i32 = arith.constant 1 : i32
    %53 = vector.broadcast %c1_i32 : i32 to vector<8x128xi32>
    %54 = arith.cmpi eq, %45, %53 : vector<8x128xi32>
    %55 = arith.andi %52, %54 : vector<8x128xi1>
    %cst_16 = arith.constant 0.000000e+00 : f32
    %56 = vector.shape_cast %43 : vector<1x1xf32> to vector<1x1xf32>
    %57 = vector.broadcast %56 : vector<1x1xf32> to vector<8x128xf32>
    %58 = vector.broadcast %cst_16 : f32 to vector<8x128xf32>
    %59 = arith.select %55, %57, %58 : vector<8x128xi1>, vector<8x128xf32>
    %60 = vector.shape_cast %38 : vector<1x1xf32> to vector<1x1xf32>
    %61 = vector.broadcast %60 : vector<1x1xf32> to vector<8x128xf32>
    %62 = arith.select %50, %61, %59 : vector<8x128xi1>, vector<8x128xf32>
    %c0_17 = arith.constant 0 : index
    %c0_18 = arith.constant 0 : index
    %63 = vector.load %arg4[%c0_17, %c0_18] : memref<8x128xf32, #tpu.memory_space<vmem>>, vector<8x128xf32>
    tpu.vector_store %arg4[%c0_17, %c0_18], %62 {strides = array<i32>} : memref<8x128xf32, #tpu.memory_space<vmem>>, vector<8x128xf32>,
    return
  }
  func.func @transform_0(%arg0: i32) -> (i32, i32) {
    %c0_i32 = arith.constant 0 : i32
    %c0_i32_0 = arith.constant 0 : i32
    return %arg0, %c0_i32 : i32, i32
  }
  func.func @transform_1(%arg0: i32) -> (i32, i32) {
    %c0_i32 = arith.constant 0 : i32
    %c0_i32_0 = arith.constant 0 : i32
    return %arg0, %c0_i32 : i32, i32
  }
  func.func @transform_2(%arg0: i32) -> (i32, i32) {
    %c0_i32 = arith.constant 0 : i32
    %c0_i32_0 = arith.constant 0 : i32
    %c0_i32_1 = arith.constant 0 : i32
    return %c0_i32, %c0_i32_0 : i32, i32
  }
  func.func @transform_3(%arg0: i32) -> (i32, i32) {
    %c0_i32 = arith.constant 0 : i32
    %c0_i32_0 = arith.constant 0 : i32
    return %arg0, %c0_i32 : i32, i32
  }
}

</mosaic_0001>

<llo_original>
// kernel: tpu_custom_call.1
$region0: #{tpu_custom_call.1}
  #allocation0 [shape = 'u32[]', space=smem, size = 0x4, offset = 0x4, fixed_abs, tag = 'smem constant byte address 0x4 - core index']
  #allocation1 [shape = 'u32[72,128]{1,0:T(1,128)}', space=vmem, size = 0x9000, scoped, tag = 'internal scratch']
  %s0 = inlined_call_operand.vmem [shape: f32[16,32], index: 0, kind: input, shape index: {}]
  %s1 = inlined_call_operand.vmem [shape: s32[16,1], index: 1, kind: input, shape index: {}]
  %s2 = inlined_call_operand.vmem [shape: f32[1,32], index: 2, kind: input, shape index: {}]
  %s3 = inlined_call_operand.hbm [shape: f32[8,128], index: 3, kind: output, shape index: {}]
  %s4 = sld [smem:[#allocation0]]
  $region22: #{tpu_custom_call.1} parent=0
    _
  %s6 = ssub.s32 1, %s4
  %s7 = scalar_select 0, %s6, %s4
  $region1: #{tpu_custom_call.1} parent=0
    #allocation2 [shape = 'u8[4096]{0}', space=vmem, size = 0x1000, scoped, tag = 'output window, operand 0, single buffered']
    #allocation3 [shape = 's32[1]{0}', space=sflag, size = 0x4, scoped, tag = 'scoped memory for tpu_custom_call.1']
    %8 = vsyncpa [#allocation3], 0
    // Predicated region
    $region2: #{tpu_custom_call.1} parent=1 // pred_check
      _
    $region3: #{tpu_custom_call.1} parent=1 // pred_check_branch
      %10 = sbr.rel (0) target = $region5
    $region4: #{tpu_custom_call.1} parent=1 // pred_region
      _
    $region5: #{tpu_custom_call.1} parent=1 // pred_fallthru
      _
    // Predicated region
    $region6: #{tpu_custom_call.1} parent=1 // pred_check
      _
    $region7: #{tpu_custom_call.1} parent=1 // pred_check_branch
      %12 = sbr.rel (0) target = $region9
    $region8: #{tpu_custom_call.1} parent=1 // pred_region
      _
    $region9: #{tpu_custom_call.1} parent=1 // pred_fallthru
      _
    // Predicated region
    $region10: #{tpu_custom_call.1} parent=1 // pred_check
      _
    $region11: #{tpu_custom_call.1} parent=1 // pred_check_branch
      %14 = sbr.rel (0) target = $region13
    $region12: #{tpu_custom_call.1} parent=1 // pred_region
      _
    $region13: #{tpu_custom_call.1} parent=1 // pred_fallthru
      _
    %v15 = vld [vmem:[%s0] sm:$0xff]
    %v16 = vld [vmem:[%s0 + $0x8] sm:$0xff]
    %v17 = vld [vmem:[%s1] sm:$0xff]
    %v18 = vld [vmem:[%s1 + $0x8] sm:$0xff]
    %v19 = vld [vmem:[%s2] sm:$0x1]
    %vm20 = vcmask 261120
    %v21 = vsel %vm20, %v15, -inf
    %22 = vmax.xlane.f32.xlu0 %v21
    %v23 = vpop.xlane.xlu0 %22
    %v24 = vsel %vm20, %v16, -inf
    %25 = vmax.xlane.f32.xlu0 %v24
    %v26 = vpop.xlane.xlu0 %25
    %v27 = vsub.f32 %v15, %v23
    %v28 = vsub.f32 %v16, %v26
    %v29 = vmul.f32 %v27, 1.442695
    %v30 = vpow.pop %v29
    %v31 = vmul.f32 %v28, 1.442695
    %v32 = vpow.pop %v31
    %v33 = vsel %vm20, %v30, 0.0
    %34 = vadd.xlane.f32.xlu0 %v33
    %v35 = vpop.xlane.xlu0 %34
    %v36 = vsel %vm20, %v32, 0.0
    %37 = vadd.xlane.f32.xlu0 %v36
    %v38 = vpop.xlane.xlu0 %37
    %v39 = vlog2.pop %v35
    %v40 = vmul.f32 %v39, 0.6931472
    %v41 = vlog2.pop %v38
    %v42 = vmul.f32 %v41, 0.6931472
    %v43 = vadd.f32 %v40, %v23
    %v44 = vadd.f32 %v42, %v26
    %v45 = vlaneseq
    %v46 = vand.u32 %v45, 127
    %47 = vset.pattern.permute.xlu0 0
    %48 = vperm.xlu0 %47, %v17
    %v49 = vpop.permute.xlu0 %48
    %50 = vset.pattern.permute.xlu0 0
    %51 = vperm.xlu0 %50, %v18
    %v52 = vpop.permute.xlu0 %51
    %vm53 = vcmp.eq.s32.totalorder %v46, %v49
    %vm54 = vcmp.eq.s32.totalorder %v46, %v52
    %v55 = vsel %vm53, %v15, 0.0
    %v56 = vsel %vm54, %v16, 0.0
    %v57 = vsel %vm20, %v55, 0.0
    %58 = vadd.xlane.f32.xlu0 %v57
    %v59 = vpop.xlane.xlu0 %58
    %v60 = vsel %vm20, %v56, 0.0
    %61 = vadd.xlane.f32.xlu0 %v60
    %v62 = vpop.xlane.xlu0 %61
    %v64 = vperm.slane %v19, 0
    %v66 = vsel %vm53, %v64, 0.0
    %v67 = vsel %vm54, %v64, 0.0
    %v68 = vsel %vm20, %v66, 0.0
    %69 = vadd.xlane.f32.xlu0 %v68
    %v70 = vpop.xlane.xlu0 %69
    %v71 = vsel %vm20, %v67, 0.0
    %72 = vadd.xlane.f32.xlu0 %v71
    %v73 = vpop.xlane.xlu0 %72
    %v74 = vsub.f32 %v59, %v43
    %v75 = vsub.f32 %v62, %v44
    %v76 = vmul.f32 %v74, 1.442695
    %v77 = vpow.pop %v76
    %v78 = vmul.f32 %v75, 1.442695
    %v79 = vpow.pop %v78
    %v80 = vsub.f32 1.0, %v77
    %v81 = vsub.f32 1.0, %v79
    %v82 = vmul.f32 %v80, %v80
    %v83 = vmul.f32 %v81, %v81
    %v84 = vmul.f32 %v82, %v74
    %v85 = vmul.f32 %v83, %v75
    %v86 = vsub.f32 0.0, %v70
    %v87 = vsub.f32 0.0, %v73
    %v88 = vmul.f32 %v86, %v84
    %v89 = vmul.f32 %v87, %v85
    %vm90 = vcmask 7168
    %v91 = vsel %vm90, %v88, 0.0
    %v92 = vsel %vm90, %v89, 0.0
    %v93 = vadd.f32 %v91, %v92
    %94 = vadd.xlane.f32.xlu0 %v93
    %v95 = vpop.xlane.xlu0 %94
    %v96 = vrot.slane %v95, 4
    %v97 = vadd.f32 %v95, %v96
    %v98 = vrot.slane %v97, 2
    %v99 = vadd.f32 %v97, %v98
    %v100 = vrot.slane %v99, 1
    %v101 = vadd.f32 %v99, %v100
    %s102 = vtos %v101
    %v103 = vsel %vm90, %v70, 0.0
    %v104 = vsel %vm90, %v73, 0.0
    %v105 = vadd.f32 %v103, %v104
    %106 = vadd.xlane.f32.xlu0 %v105
    %v107 = vpop.xlane.xlu0 %106
    %v108 = vrot.slane %v107, 4
    %v109 = vadd.f32 %v107, %v108
    %v110 = vrot.slane %v109, 2
    %v111 = vadd.f32 %v109, %v110
    %v112 = vrot.slane %v111, 1
    %v113 = vadd.f32 %v111, %v112
    %s114 = vtos %v113
    %v115 = vlaneseq
    %v116 = vshrl.u32 %v115, 7
    %vm117 = vcmp.eq.s32.totalorder %v116, 0
    %vm118 = vcmp.eq.s32.totalorder %v46, 0
    %vm119 = vmand %vm117, %vm118
    %vm120 = vcmp.eq.s32.totalorder %v46, 1
    %vm121 = vmand %vm117, %vm120
    %v122 = vstv %s114
    %v123 = vsel %vm121, %v122, 0.0
    %v124 = vstv %s102
    %v125 = vsel %vm119, %v124, %v123
    %126 = vst [vmem:[#allocation2] sm:$0xff] %v125
    // Predicated region
    $region14: #{tpu_custom_call.1} parent=1 // pred_check
      _
    $region15: #{tpu_custom_call.1} parent=1 // pred_check_branch
      %128 = sbr.rel (0) target = $region17
    $region16: #{tpu_custom_call.1} parent=1 // pred_region
      %130 = vsyncadd [#allocation3], 0
      %s132 = sshll.u32 [#allocation2], 4
      %s133 = int_to_ptr.vmem [resolvable:$true] %s132
      %s134 = sshll.u32 %s3, 4
      %s135 = int_to_ptr.hbm [resolvable:$true] %s134
      %137 = dma.vmem_to_hbm [thread:$0]  %s133, 128, %s135, [#allocation3]
    $region17: #{tpu_custom_call.1} parent=1 // pred_fallthru
      _
    // Predicated region
    $region18: #{tpu_custom_call.1} parent=1 // pred_check
      _
    $region19: #{tpu_custom_call.1} parent=1 // pred_check_branch
      %139 = sbr.rel (0) target = $region21
    $region20: #{tpu_custom_call.1} parent=1 // pred_region
      %141 = dma.done [#allocation3], 128
    $region21: #{tpu_custom_call.1} parent=1 // pred_fallthru
      _
    %142 = vsyncpa [#allocation3], 1

</llo_original>
